<compile_context>
chip_gen: v6e
topology: v6e:2x2x1
jax: 0.10.0
libtpu: 0.0.40
codegen_flags: <defaults>
</compile_context>

<pallas_src>
import math
from functools import partial

import numpy as np
import jax
import jax.numpy as jnp
from jax.experimental import pallas as pl
from jax.experimental.pallas import tpu as pltpu


def _round_up(x, m):
    return (x + m - 1) // m * m


# ----------------------------------------------------------------------------
# Fused matmul kernel:
#   out = act(LN?(A) @ B + bias) (+ residual)   [+ optional column stats of out]
# ----------------------------------------------------------------------------

def _mm_kernel(*refs, activation, has_bias, has_ln, ln_eps, has_res,
               compute_stats, rows):
    it = iter(refs)
    a_ref = next(it)
    b_ref = next(it)
    bias_ref = next(it) if has_bias else None
    if has_ln:
        g_ref = next(it)
        gb_ref = next(it)
    res_ref = next(it) if has_res else None
    o_ref = next(it)
    if compute_stats:
        sum_ref = next(it)
        sq_ref = next(it)

    a = a_ref[...]
    if has_ln:
        # matches the torch custom LayerNorm: (x - mean) / (std + eps) * g + b
        mean = jnp.mean(a, axis=-1, keepdims=True)
        var = jnp.mean(jnp.square(a - mean), axis=-1, keepdims=True)
        a = (a - mean) / (jnp.sqrt(var) + ln_eps) * g_ref[...] + gb_ref[...]
    r = jnp.dot(a, b_ref[...], preferred_element_type=jnp.float32)
    if has_bias:
        r = r + bias_ref[...]
    if activation == "relu":
        r = jnp.maximum(r, 0.0)
    elif activation == "sigmoid":
        r = jax.nn.sigmoid(r)
    if has_res:
        r = r + res_ref[...]
    o_ref[...] = r.astype(o_ref.dtype)

    if compute_stats:
        i = pl.program_id(0)

        @pl.when(i == 0)
        def _():
            sum_ref[...] = jnp.zeros_like(sum_ref)
            sq_ref[...] = jnp.zeros_like(sq_ref)

        row = i * r.shape[0] + jax.lax.broadcasted_iota(jnp.int32, r.shape, 0)
        rm = jnp.where(row < rows, r, 0.0)         # mask overhang rows
        sum_ref[...] += jnp.sum(rm, axis=0, keepdims=True)
        sq_ref[...] += jnp.sum(rm * rm, axis=0, keepdims=True)


def matmul(a, b, bias=None, activation=None, ln=None, residual=None,
           compute_stats=False):
    """act(LN?(a) @ b + bias) (+ residual).

    a:(M,K), b:(K,N).  K and N stay un-padded (full-extent blocks), only M is
    tiled; channel counts in this model are 4..2048 so K/N always fit one block.
    With compute_stats=True also returns the (1,N) column sum and sum of squares
    of the result (for a following batch-statistics BatchNorm).
    """
    M, K = a.shape
    K2, N = b.shape
    assert K == K2
    a = a.astype(jnp.float32)
    b = b.astype(jnp.float32)

    tm = min(512, _round_up(M, 8))
    grid = (pl.cdiv(M, tm),)

    in_arrays = [a, b]
    in_specs = [pl.BlockSpec((tm, K), lambda i: (i, 0)),
                pl.BlockSpec((K, N), lambda i: (0, 0))]

    has_bias = bias is not None
    if has_bias:
        in_arrays.append(bias.astype(jnp.float32).reshape(1, N))
        in_specs.append(pl.BlockSpec((1, N), lambda i: (0, 0)))

    has_ln = ln is not None
    ln_eps = 0.0
    if has_ln:
        g, gb, ln_eps = ln
        in_arrays += [g.astype(jnp.float32).reshape(1, K),
                      gb.astype(jnp.float32).reshape(1, K)]
        in_specs += [pl.BlockSpec((1, K), lambda i: (0, 0)),
                     pl.BlockSpec((1, K), lambda i: (0, 0))]

    has_res = residual is not None
    if has_res:
        in_arrays.append(residual.astype(jnp.float32).reshape(M, N))
        in_specs.append(pl.BlockSpec((tm, N), lambda i: (i, 0)))

    if compute_stats:
        out_shape = (jax.ShapeDtypeStruct((M, N), jnp.float32),
                     jax.ShapeDtypeStruct((1, N), jnp.float32),
                     jax.ShapeDtypeStruct((1, N), jnp.float32))
        out_specs = (pl.BlockSpec((tm, N), lambda i: (i, 0)),
                     pl.BlockSpec((1, N), lambda i: (0, 0)),
                     pl.BlockSpec((1, N), lambda i: (0, 0)))
        semantics = ("arbitrary",)      # stats accumulate across the M axis
    else:
        out_shape = jax.ShapeDtypeStruct((M, N), jnp.float32)
        out_specs = pl.BlockSpec((tm, N), lambda i: (i, 0))
        semantics = ("parallel",)

    return pl.pallas_call(
        partial(_mm_kernel, activation=activation, has_bias=has_bias,
                has_ln=has_ln, ln_eps=ln_eps, has_res=has_res,
                compute_stats=compute_stats, rows=M),
        out_shape=out_shape,
        grid=grid,
        in_specs=in_specs,
        out_specs=out_specs,
        compiler_params=pltpu.CompilerParams(dimension_semantics=semantics),
    )(*in_arrays)


# ----------------------------------------------------------------------------
# Attention kernel (one program per batch element, all heads batched)
# ----------------------------------------------------------------------------

def _attn_kernel(q_ref, k_ref, v_ref, o_ref, *, scale):
    q = q_ref[0] * scale                          # (heads, n, c) - scale small op
    k = k_ref[0]                                  # (heads, m, c)
    v = v_ref[0]
    sim = jnp.einsum('hnc,hmc->hnm', q, k, preferred_element_type=jnp.float32)
    sim = sim - jnp.max(sim, axis=-1, keepdims=True)
    p = jnp.exp(sim)
    inv = pl.reciprocal(jnp.sum(p, axis=-1, keepdims=True), approx=True)
    out = jnp.einsum('hnm,hmc->hnc', p * inv, v,
                     preferred_element_type=jnp.float32)
    o_ref[...] = out[None]


def attention(q, k, v, scale):
    """q:(B,heads,n,c)  k,v:(B,heads,m,c)  ->  (B,heads,n,c)"""
    # TODO(synk): head dim (c=8) stays the lane axis; lane-dense repacking of
    # q/k/v would further improve load/store efficiency.
    B, heads, n, c = q.shape
    m = k.shape[2]
    return pl.pallas_call(
        partial(_attn_kernel, scale=scale),
        out_shape=jax.ShapeDtypeStruct((B, heads, n, c), jnp.float32),
        grid=(B,),
        in_specs=[pl.BlockSpec((1, heads, n, c), lambda b: (b, 0, 0, 0)),
                  pl.BlockSpec((1, heads, m, c), lambda b: (b, 0, 0, 0)),
                  pl.BlockSpec((1, heads, m, c), lambda b: (b, 0, 0, 0))],
        out_specs=pl.BlockSpec((1, heads, n, c), lambda b: (b, 0, 0, 0)),
        compiler_params=pltpu.CompilerParams(dimension_semantics=("parallel",)),
    )(q, k, v)


# ----------------------------------------------------------------------------
# Channel LayerNorm (row-tiled) — only used when it cannot be fused into a matmul
# ----------------------------------------------------------------------------

def _ln_kernel(x_ref, g_ref, b_ref, o_ref, *, eps):
    x = x_ref[...]
    mean = jnp.mean(x, axis=-1, keepdims=True)
    var = jnp.mean(jnp.square(x - mean), axis=-1, keepdims=True)
    o_ref[...] = (x - mean) / (jnp.sqrt(var) + eps) * g_ref[...] + b_ref[...]


def channel_layernorm(x, g, b, eps=1e-5):
    N, H, W, C = x.shape
    M = N * H * W
    x2 = x.reshape(M, C).astype(jnp.float32)
    tm = min(1024, _round_up(M, 8))
    out = pl.pallas_call(
        partial(_ln_kernel, eps=eps),
        out_shape=jax.ShapeDtypeStruct((M, C), jnp.float32),
        grid=(pl.cdiv(M, tm),),
        in_specs=[pl.BlockSpec((tm, C), lambda i: (i, 0)),
                  pl.BlockSpec((1, C), lambda i: (0, 0)),
                  pl.BlockSpec((1, C), lambda i: (0, 0))],
        out_specs=pl.BlockSpec((tm, C), lambda i: (i, 0)),
        compiler_params=pltpu.CompilerParams(dimension_semantics=("parallel",)),
    )(x2, g.reshape(1, C), b.reshape(1, C))
    return out.reshape(N, H, W, C)


# ----------------------------------------------------------------------------
# BatchNorm apply (+ ReLU, + optional fused skip add); stats come from the
# preceding fused matmul pass.
# ----------------------------------------------------------------------------

def _bn_apply_kernel(*refs, relu, has_res):
    it = iter(refs)
    x_ref = next(it)
    s_ref = next(it)
    t_ref = next(it)
    r_ref = next(it) if has_res else None
    o_ref = next(it)
    y = x_ref[...] * s_ref[...] + t_ref[...]
    if relu:
        y = jnp.maximum(y, 0.0)
    if has_res:
        y = y + r_ref[...]
    o_ref[...] = y


def bn_relu_apply(x, ssum, ssq, count, g, b, eps=1e-5, residual=None):
    """Training-mode BatchNorm2d (batch stats, stats precomputed) + ReLU;
    optional residual added after the ReLU (matches
    `downsampleConv(fm[i]) + fused[i+1]`)."""
    N, H, W, C = x.shape
    M = N * H * W
    x2 = x.reshape(M, C).astype(jnp.float32)

    mean = ssum.reshape(1, C) / count
    var = jnp.maximum(ssq.reshape(1, C) / count - mean * mean, 0.0)
    scale = g.reshape(1, C).astype(jnp.float32) / jnp.sqrt(var + eps)
    shift = b.reshape(1, C).astype(jnp.float32) - mean * scale

    tm = min(1024, _round_up(M, 8))
    grid = (pl.cdiv(M, tm),)
    in_arrays = [x2, scale, shift]
    in_specs = [pl.BlockSpec((tm, C), lambda i: (i, 0)),
                pl.BlockSpec((1, C), lambda i: (0, 0)),
                pl.BlockSpec((1, C), lambda i: (0, 0))]
    has_res = residual is not None
    if has_res:
        in_arrays.append(residual.reshape(M, C).astype(jnp.float32))
        in_specs.append(pl.BlockSpec((tm, C), lambda i: (i, 0)))

    out = pl.pallas_call(
        partial(_bn_apply_kernel, relu=True, has_res=has_res),
        out_shape=jax.ShapeDtypeStruct((M, C), jnp.float32),
        grid=grid,
        in_specs=in_specs,
        out_specs=pl.BlockSpec((tm, C), lambda i: (i, 0)),
        compiler_params=pltpu.CompilerParams(dimension_semantics=("parallel",)),
    )(*in_arrays)
    return out.reshape(N, H, W, C)


# ----------------------------------------------------------------------------
# Depthwise 3x3 conv (stride 1, pad 1)
# ----------------------------------------------------------------------------

def _dwconv3_kernel(x_ref, w_ref, b_ref, o_ref):
    _, H, W, C = o_ref.shape
    x = x_ref[...]                                 # (1, H+2, W+2, C)
    w = w_ref[...]                                 # (3, 3, C)
    acc = jnp.zeros(o_ref.shape, jnp.float32)
    for dy in range(3):
        for dx in range(3):
            acc = acc + x[:, dy:dy + H, dx:dx + W, :] * w[dy, dx]
    o_ref[...] = acc + b_ref[...].reshape(1, 1, 1, C)


def depthwise_conv3x3(x, w, b):
    N, H, W, C = x.shape
    xp = jnp.pad(x, ((0, 0), (1, 1), (1, 1), (0, 0)))
    return pl.pallas_call(
        _dwconv3_kernel,
        out_shape=jax.ShapeDtypeStruct((N, H, W, C), jnp.float32),
        grid=(N,),
        in_specs=[pl.BlockSpec((1, H + 2, W + 2, C), lambda n: (n, 0, 0, 0)),
                  pl.BlockSpec((3, 3, C), lambda n: (0, 0, 0)),
                  pl.BlockSpec((1, C), lambda n: (0, 0))],
        out_specs=pl.BlockSpec((1, H, W, C), lambda n: (n, 0, 0, 0)),
        compiler_params=pltpu.CompilerParams(dimension_semantics=("parallel",)),
    )(xp, w, b.reshape(1, C))


# ----------------------------------------------------------------------------
# Plain-JAX glue: im2col, space-to-depth
# ----------------------------------------------------------------------------

def extract_patches(x, kh, kw, stride, padding):
    """NHWC im2col. Returns (N, Ho, Wo, kh*kw*C) with (dy, dx, c) ordering."""
    # TODO(synk): overlapping-window extraction still materialized in HBM; fusing
    # it into the matmul needs in-kernel strided loads.
    N, H, W, C = x.shape
    xp = jnp.pad(x, ((0, 0), (padding, padding), (padding, padding), (0, 0)))
    Ho = (H + 2 * padding - kh) // stride + 1
    Wo = (W + 2 * padding - kw) // stride + 1
    cols = []
    for dy in range(kh):
        for dx in range(kw):
            cols.append(xp[:, dy:dy + (Ho - 1) * stride + 1:stride,
                           dx:dx + (Wo - 1) * stride + 1:stride, :])
    return jnp.concatenate(cols, axis=-1), Ho, Wo


def space_to_depth(x, r):
    """Non-overlapping r x r patches (kernel == stride, no pad) as a pure reshape."""
    N, H, W, C = x.shape
    Hr, Wr = H // r, W // r
    x = x[:, :Hr * r, :Wr * r, :]
    x = x.reshape(N, Hr, r, Wr, r, C)
    x = jnp.transpose(x, (0, 1, 3, 2, 4, 5))
    return x.reshape(N, Hr, Wr, r * r * C)


# ----------------------------------------------------------------------------
# Conv wrappers (with fused BN-stats where a BatchNorm follows)
# ----------------------------------------------------------------------------

def conv1x1(x, w, b=None, activation=None, ln=None, residual=None):
    N, H, W, Cin = x.shape
    res = None if residual is None else residual.reshape(N * H * W, -1)
    out = matmul(x.reshape(N * H * W, Cin), w, bias=b, activation=activation,
                 ln=ln, residual=res)
    return out.reshape(N, H, W, -1)


def conv1x1_bn_relu(x, w, b, bn_g, bn_b, eps=1e-5, residual=None):
    N, H, W, Cin = x.shape
    Cout = w.shape[1]
    out, ssum, ssq = matmul(x.reshape(N * H * W, Cin), w, bias=b,
                            compute_stats=True)
    return bn_relu_apply(out.reshape(N, H, W, Cout), ssum, ssq, N * H * W,
                         bn_g, bn_b, eps, residual=residual)


def conv2d_bn_relu(x, w, b, bn_g, bn_b, stride, padding, eps=1e-5,
                   residual=None):
    """w: (kh, kw, Cin, Cout); Conv2d -> BatchNorm -> ReLU (-> + residual)."""
    kh, kw, Cin, Cout = w.shape
    patches, Ho, Wo = extract_patches(x, kh, kw, stride, padding)
    N = x.shape[0]
    out, ssum, ssq = matmul(patches.reshape(N * Ho * Wo, kh * kw * Cin),
                            w.reshape(kh * kw * Cin, Cout), bias=b,
                            compute_stats=True)
    return bn_relu_apply(out.reshape(N, Ho, Wo, Cout), ssum, ssq, N * Ho * Wo,
                         bn_g, bn_b, eps, residual=residual)


def make_subpixel_weight(w, stride, padding):
    """Convert an 'equivalent regular conv' transposed-conv weight (k,k,Cin,Cout)
    into a (9*Cin, stride*stride*Cout) matrix for the sub-pixel decomposition
    (valid for kernel == 2*stride, which holds for every ConvTranspose2d here)."""
    k, _, cin, cout = w.shape
    s = stride
    assert k == 2 * s, "sub-pixel decomposition assumes kernel == 2*stride"
    P = k - 1 - padding
    wn = np.asarray(w)
    big = np.zeros((3, 3, cin, s, s, cout), np.float32)
    for ry in range(s):
        dy0, offy = (P - ry) % s, (P - ry) // s
        for rx in range(s):
            dx0, offx = (P - rx) % s, (P - rx) // s
            for ty in range(2):
                for tx in range(2):
                    big[1 - offy + ty, 1 - offx + tx, :, ry, rx, :] = \
                        wn[dy0 + s * ty, dx0 + s * tx]
    return jnp.asarray(big.reshape(9 * cin, s * s * cout))


def conv_transpose2d_bn_relu(x, w_big, b, stride, bn_g, bn_b, eps=1e-5):
    """ConvTranspose2d via sub-pixel decomposition (3x3/pad-1 im2col of the small
    input + one lane-dense matmul + depth-to-space), with the BN column stats
    emitted by the same matmul pass (reduced over the s*s sub-pixel groups)."""
    N, H, W, Cin = x.shape
    s = stride
    Cout = w_big.shape[1] // (s * s)
    patches, _, _ = extract_patches(x, 3, 3, 1, 1)          # (N, H, W, 9*Cin)
    bias = None if b is None else jnp.tile(b.astype(jnp.float32), s * s)
    out, ssum, ssq = matmul(patches.reshape(N * H * W, 9 * Cin), w_big,
                            bias=bias, compute_stats=True)
    ssum_c = ssum.reshape(s * s, Cout).sum(axis=0)
    ssq_c = ssq.reshape(s * s, Cout).sum(axis=0)
    out = out.reshape(N, H, W, s, s, Cout)
    out = jnp.transpose(out, (0, 1, 3, 2, 4, 5)).reshape(N, H * s, W * s, Cout)
    return bn_relu_apply(out, ssum_c, ssq_c, N * H * W * s * s,
                         bn_g, bn_b, eps)


# ----------------------------------------------------------------------------
# Model blocks
# ----------------------------------------------------------------------------

def efficient_self_attention(x, p, heads, reduction_ratio, ln_g, ln_b, eps=1e-5):
    N, H, W, C = x.shape
    ch = C // heads
    scale = ch ** (-0.5)
    x_flat = x.reshape(N * H * W, C)

    if reduction_ratio > 1:
        # LN output feeds both q and the space-to-depth kv path -> materialize once.
        xn = channel_layernorm(x, ln_g, ln_b, eps)
        q = matmul(xn.reshape(N * H * W, C), p["to_q"])
        Hr, Wr = H // reduction_ratio, W // reduction_ratio
        kv_in = space_to_depth(xn, reduction_ratio)
        kv = matmul(kv_in.reshape(N * Hr * Wr, -1), p["to_kv"])
    else:
        # LN fused into the projections (no materialized normalized tensor).
        Hr, Wr = H, W
        q = matmul(x_flat, p["to_q"], ln=(ln_g, ln_b, eps))
        kv = matmul(x_flat, p["to_kv"], ln=(ln_g, ln_b, eps))

    k, v = kv[:, :C], kv[:, C:]

    def to_bhnc(t, hh, ww):
        t = t.reshape(N, hh * ww, heads, ch)
        return jnp.transpose(t, (0, 2, 1, 3))                # (N, heads, n, ch)

    ob = attention(to_bhnc(q, H, W), to_bhnc(k, Hr, Wr), to_bhnc(v, Hr, Wr),
                   scale)
    o = jnp.transpose(ob, (0, 2, 1, 3)).reshape(N * H * W, C)
    out = matmul(o, p["to_out"], residual=x_flat)            # fused "+ x" residual
    return out.reshape(N, H, W, C)


def mix_feedforward(x, p, ln_g, ln_b, eps=1e-5):
    N, H, W, C = x.shape
    x_flat = x.reshape(N * H * W, C)
    h = matmul(x_flat, p["w1"], bias=p["b1"], ln=(ln_g, ln_b, eps))  # LN fused
    hidden = h.shape[1]
    h = depthwise_conv3x3(h.reshape(N, H, W, hidden), p["dw_w"], p["dw_b"])
    h = matmul(h.reshape(N * H * W, hidden), p["pw_w"], bias=p["pw_b"])
    # TODO(synk): exact-erf GELU kept in plain JAX (erf lowering in Mosaic not guaranteed)
    h = jax.nn.gelu(h, approximate=False)
    h = matmul(h, p["w2"], bias=p["b2"], residual=x_flat)            # fused "+ x"
    return h.reshape(N, H, W, C)


def mit_forward(x, params):
    stage_ksp = ((7, 2, 3), (3, 2, 1), (3, 2, 1), (3, 2, 1))
    outs = []
    for si, (k, s, p) in enumerate(stage_ksp):
        sp = params["stages"][si]
        patches, Ho, Wo = extract_patches(x, k, k, s, p)   # nn.Unfold + 1x1 conv
        N = x.shape[0]
        x = matmul(patches.reshape(N * Ho * Wo, -1),
                   sp["embed_w"], bias=sp["embed_b"]).reshape(N, Ho, Wo, -1)
        for lp in sp["layers"]:
            x = efficient_self_attention(x, lp["attn"], lp["heads"], lp["rr"],
                                         lp["ln1_g"], lp["ln1_b"])
            x = mix_feedforward(x, lp["ff"], lp["ln2_g"], lp["ln2_b"])
        outs.append(x)
    return outs


def de_segformer_forward(x_nchw, params):
    x = jnp.transpose(x_nchw, (0, 2, 3, 1))                    # NCHW -> NHWC
    layer_outputs = mit_forward(x, params["mit"])

    fused = [conv1x1_bn_relu(out, dp["w"], dp["b"], dp["bn_g"], dp["bn_b"])
             for out, dp in zip(layer_outputs, params["decode_stage_1"])]

    fm = [fused[0]]
    dw = params["downsample"]
    for i in range(3):
        fm.append(conv2d_bn_relu(fm[i], dw["w"], dw["b"], dw["bn_g"], dw["bn_b"],
                                 stride=2, padding=1,
                                 residual=fused[i + 1]))        # fused skip add

    for scale in (1, 2, 3):
        up = params["up%d" % scale]
        fm[scale] = conv_transpose2d_bn_relu(fm[scale], up["w_big"], None,
                                             2 ** scale, up["bn_g"], up["bn_b"])

    cat = jnp.concatenate(fm, axis=-1)
    sp = params["seg"]
    y = conv1x1_bn_relu(cat, sp["w1"], sp["b1"], sp["bn1_g"], sp["bn1_b"])
    y = conv_transpose2d_bn_relu(y, sp["tw_big"], sp["tb"], 2,
                                 sp["bn2_g"], sp["bn2_b"])
    y = conv1x1(y, sp["w2"], sp["b2"], activation="sigmoid")   # fused sigmoid
    return jnp.transpose(y, (0, 3, 1, 2))                      # NHWC -> NCHW


# ----------------------------------------------------------------------------
# Deterministic parameter initialization (synthetic, shapes from __init__).
# NOTE: patch ordering is (dy, dx, c) and transposed-conv weights are stored in
# the equivalent regular-conv form; porting real torch weights would need the
# corresponding permutations/flips.
# ----------------------------------------------------------------------------

class ParamInit:
    def __init__(self, seed=0):
        self._key = jax.random.PRNGKey(seed)

    def normal(self, shape, scale=0.05):
        self._key, sub = jax.random.split(self._key)
        return scale * jax.random.normal(sub, shape, jnp.float32)

    def zeros(self, shape):
        return jnp.zeros(shape, jnp.float32)

    def ones(self, shape):
        return jnp.ones(shape, jnp.float32)


def build_params(cfg, init):
    dims, heads = cfg["dims"], cfg["heads"]
    ffe, rr, nl = cfg["ff_expansion"], cfg["reduction_ratio"], cfg["num_layers"]
    band, dd, nc = cfg["band_num"], cfg["decoder_dim"], cfg["num_classes"]
    stage_ksp = ((7, 2, 3), (3, 2, 1), (3, 2, 1), (3, 2, 1))
    in_dims = (band,) + tuple(dims[:-1])

    stages = []
    for si in range(4):
        din, dout = in_dims[si], dims[si]
        k, _, _ = stage_ksp[si]
        layers = []
        for _ in range(nl[si]):
            hidden = dout * ffe[si]
            layers.append(dict(
                heads=heads[si], rr=rr[si],
                ln1_g=init.ones((dout,)), ln1_b=init.zeros((dout,)),
                ln2_g=init.ones((dout,)), ln2_b=init.zeros((dout,)),
                attn=dict(
                    to_q=init.normal((dout, dout)),
                    to_kv=init.normal((rr[si] * rr[si] * dout, 2 * dout)),
                    to_out=init.normal((dout, dout)),
                ),
                ff=dict(
                    w1=init.normal((dout, hidden)), b1=init.normal((hidden,)),
                    dw_w=init.normal((3, 3, hidden)), dw_b=init.normal((hidden,)),
                    pw_w=init.normal((hidden, hidden)), pw_b=init.normal((hidden,)),
                    w2=init.normal((hidden, dout)), b2=init.normal((dout,)),
                ),
            ))
        stages.append(dict(embed_w=init.normal((k * k * din, dout)),
                           embed_b=init.normal((dout,)),
                           layers=layers))

    params = dict(mit=dict(stages=stages))
    params["decode_stage_1"] = [
        dict(w=init.normal((d, dd)), b=init.normal((dd,)),
             bn_g=init.ones((dd,)), bn_b=init.zeros((dd,))) for d in dims]
    params["downsample"] = dict(w=init.normal((3, 3, dd, dd)),
                                b=init.normal((dd,)),
                                bn_g=init.ones((dd,)), bn_b=init.zeros((dd,)))
    for scale in (1, 2, 3):
        k = 2 ** scale * 2
        w = init.normal((k, k, dd, dd))
        params["up%d" % scale] = dict(
            w_big=make_subpixel_weight(w, 2 ** scale, 2 ** (scale - 1)),
            bn_g=init.ones((dd,)), bn_b=init.zeros((dd,)))
    tw = init.normal((4, 4, dd, dd))
    params["seg"] = dict(
        w1=init.normal((dd * 4, dd)), b1=init.normal((dd,)),
        bn1_g=init.ones((dd,)), bn1_b=init.zeros((dd,)),
        tw_big=make_subpixel_weight(tw, 2, 1), tb=init.normal((dd,)),
        bn2_g=init.ones((dd,)), bn2_b=init.zeros((dd,)),
        w2=init.normal((dd, nc)), b2=init.normal((nc,)),
    )
    return params


# ----------------------------------------------------------------------------
if __name__ == "__main__":
    cfg = dict(dims=(8, 16, 32, 32), heads=(1, 2, 4, 4),
               ff_expansion=(2, 2, 2, 2), reduction_ratio=(8, 4, 2, 1),
               num_layers=(1, 1, 1, 1), band_num=3,
               decoder_dim=32, num_classes=4)

    params = build_params(cfg, ParamInit(0))

    key = jax.random.PRNGKey(0)
    x = jax.random.normal(key, (2, cfg["band_num"], 32, 32), jnp.float32)

    out = de_segformer_forward(x, params)
    out = jax.block_until_ready(out)

    assert out.shape == (2, cfg["num_classes"], 32, 32), out.shape
    assert bool(jnp.all(jnp.isfinite(out)))
    assert bool(jnp.all((out >= 0.0) & (out <= 1.0)))   # sigmoid range
    print("KERNEL_OK")
</pallas_src>

<mosaic_0001>
module attributes {stable_mosaic.version = 11 : i64} {
  func.func @_mm_kernel(%arg0: i32, %arg1: memref<512x147xf32, #tpu.memory_space<vmem>>, %arg2: memref<147x8xf32, #tpu.memory_space<vmem>>, %arg3: memref<1x8xf32, #tpu.memory_space<vmem>>, %arg4: memref<512x8xf32, #tpu.memory_space<vmem>>) attributes {dimension_semantics = [#tpu.dimension_semantics<parallel>], iteration_bounds = array<i64: 1>, scalar_prefetch = 0 : i64, scratch_operands = 0 : i64, tpu.core_type = #tpu.core_type<tc>, window_params = [{transform_indices = @transform_0, window_bounds = array<i64: 512, 147>}, {pipeline_mode = #tpu.pipeline_mode<synchronous>, transform_indices = @transform_1, window_bounds = array<i64: 147, 8>}, {pipeline_mode = #tpu.pipeline_mode<synchronous>, transform_indices = @transform_2, window_bounds = array<i64: 1, 8>}, {transform_indices = @transform_3, window_bounds = array<i64: 512, 8>}]} {
    %c0 = arith.constant 0 : index
    %c0_0 = arith.constant 0 : index
    %0 = vector.load %arg1[%c0, %c0_0] : memref<512x147xf32, #tpu.memory_space<vmem>>, vector<512x147xf32>
    %c0_1 = arith.constant 0 : index
    %c0_2 = arith.constant 0 : index
    %1 = vector.load %arg2[%c0_1, %c0_2] : memref<147x8xf32, #tpu.memory_space<vmem>>, vector<147x8xf32>
    %cst = arith.constant dense<0.000000e+00> : vector<512x8xf32>
    %2 = tpu.matmul %0, %1, %cst {dimension_numbers = #tpu.dot_dimension_numbers<[1], [0], [0], [1], [0, 0, 1, 1], [], []>} : vector<512x147xf32>, vector<147x8xf32>, vector<512x8xf32> -> vector<512x8xf32>
    %c0_3 = arith.constant 0 : index
    %c0_4 = arith.constant 0 : index
    %3 = vector.load %arg3[%c0_3, %c0_4] : memref<1x8xf32, #tpu.memory_space<vmem>>, vector<1x8xf32>
    %4 = vector.broadcast %3 : vector<1x8xf32> to vector<512x8xf32>
    %5 = arith.addf %2, %4 : vector<512x8xf32>
    %c0_5 = arith.constant 0 : index
    %c0_6 = arith.constant 0 : index
    %6 = vector.load %arg4[%c0_5, %c0_6] : memref<512x8xf32, #tpu.memory_space<vmem>>, vector<512x8xf32>
    tpu.vector_store %arg4[%c0_5, %c0_6], %5 {strides = array<i32>} : memref<512x8xf32, #tpu.memory_space<vmem>>, vector<512x8xf32>,
    return
  }
  func.func @transform_0(%arg0: i32) -> (i32, i32) {
    %c0_i32 = arith.constant 0 : i32
    %c0_i32_0 = arith.constant 0 : i32
    return %arg0, %c0_i32 : i32, i32
  }
  func.func @transform_1(%arg0: i32) -> (i32, i32) {
    %c0_i32 = arith.constant 0 : i32
    %c0_i32_0 = arith.constant 0 : i32
    %c0_i32_1 = arith.constant 0 : i32
    return %c0_i32, %c0_i32_0 : i32, i32
  }
  func.func @transform_2(%arg0: i32) -> (i32, i32) {
    %c0_i32 = arith.constant 0 : i32
    %c0_i32_0 = arith.constant 0 : i32
    %c0_i32_1 = arith.constant 0 : i32
    return %c0_i32, %c0_i32_0 : i32, i32
  }
  func.func @transform_3(%arg0: i32) -> (i32, i32) {
    %c0_i32 = arith.constant 0 : i32
    %c0_i32_0 = arith.constant 0 : i32
    return %arg0, %c0_i32 : i32, i32
  }
}

</mosaic_0001>

<llo_original>
// kernel: tpu_custom_call.1
$region0: #{tpu_custom_call.1}
  #allocation0 [shape = 'u32[]', space=smem, size = 0x4, offset = 0x4, fixed_abs, tag = 'smem constant byte address 0x4 - core index']
  #allocation1 [shape = 'u32[144,128]{1,0:T(1,128)}', space=vmem, size = 0x12000, scoped, tag = 'internal scratch']
  %s0 = inlined_call_operand.vmem [shape: f32[512,147], index: 0, kind: input, shape index: {}]
  %s1 = inlined_call_operand.vmem [shape: f32[147,8], index: 1, kind: input, shape index: {}]
  %s2 = inlined_call_operand.vmem [shape: f32[1,8], index: 2, kind: input, shape index: {}]
  %s3 = inlined_call_operand.vmem [shape: f32[512,8], index: 3, kind: output, shape index: {}]
  %s4 = sld [smem:[#allocation0]]
  $region22: #{tpu_custom_call.1} parent=0
    _
  %s6 = ssub.s32 1, %s4
  %s7 = scalar_select 0, %s6, %s4
  // Predicated region
  $region2: #{tpu_custom_call.1} parent=0 // pred_check
    _
  $region3: #{tpu_custom_call.1} parent=0 // pred_check_branch
    %9 = sbr.rel (0) target = $region5
  $region4: #{tpu_custom_call.1} parent=0 // pred_region
    _
  $region5: #{tpu_custom_call.1} parent=0 // pred_fallthru
    _
  // Predicated region
  $region6: #{tpu_custom_call.1} parent=0 // pred_check
    _
  $region7: #{tpu_custom_call.1} parent=0 // pred_check_branch
    %11 = sbr.rel (0) target = $region9
  $region8: #{tpu_custom_call.1} parent=0 // pred_region
    _
  $region9: #{tpu_custom_call.1} parent=0 // pred_fallthru
    _
  // Predicated region
  $region10: #{tpu_custom_call.1} parent=0 // pred_check
    _
  $region11: #{tpu_custom_call.1} parent=0 // pred_check_branch
    %13 = sbr.rel (0) target = $region13
  $region12: #{tpu_custom_call.1} parent=0 // pred_region
    _
  $region13: #{tpu_custom_call.1} parent=0 // pred_fallthru
    _
  %v14 = vld [vmem:[%s0] sm:$0xff]
  %v15 = vld [vmem:[%s0 + $0x8] sm:$0xff]
  %v16 = vld [vmem:[%s0 + $0x10] sm:$0xff]
  %v17 = vld [vmem:[%s0 + $0x18] sm:$0xff]
  %v18 = vld [vmem:[%s0 + $0x20] sm:$0xff]
  %v19 = vld [vmem:[%s0 + $0x28] sm:$0xff]
  %v20 = vld [vmem:[%s0 + $0x30] sm:$0xff]
  %v21 = vld [vmem:[%s0 + $0x38] sm:$0xff]
  %v22 = vld [vmem:[%s0 + $0x40] sm:$0xff]
  %v23 = vld [vmem:[%s0 + $0x48] sm:$0xff]
  %v24 = vld [vmem:[%s0 + $0x50] sm:$0xff]
  %v25 = vld [vmem:[%s0 + $0x58] sm:$0xff]
  %v26 = vld [vmem:[%s0 + $0x60] sm:$0xff]
  %v27 = vld [vmem:[%s0 + $0x68] sm:$0xff]
  %v28 = vld [vmem:[%s0 + $0x70] sm:$0xff]
  %v29 = vld [vmem:[%s0 + $0x78] sm:$0xff]
  %v30 = vld [vmem:[%s0 + $0x80] sm:$0xff]
  %v31 = vld [vmem:[%s0 + $0x88] sm:$0xff]
  %v32 = vld [vmem:[%s0 + $0x90] sm:$0xff]
  %v33 = vld [vmem:[%s0 + $0x98] sm:$0xff]
  %v34 = vld [vmem:[%s0 + $0xa0] sm:$0xff]
  %v35 = vld [vmem:[%s0 + $0xa8] sm:$0xff]
  %v36 = vld [vmem:[%s0 + $0xb0] sm:$0xff]
  %v37 = vld [vmem:[%s0 + $0xb8] sm:$0xff]
  %v38 = vld [vmem:[%s0 + $0xc0] sm:$0xff]
  %v39 = vld [vmem:[%s0 + $0xc8] sm:$0xff]
  %v40 = vld [vmem:[%s0 + $0xd0] sm:$0xff]
  %v41 = vld [vmem:[%s0 + $0xd8] sm:$0xff]
  %v42 = vld [vmem:[%s0 + $0xe0] sm:$0xff]
  %v43 = vld [vmem:[%s0 + $0xe8] sm:$0xff]
  %v44 = vld [vmem:[%s0 + $0xf0] sm:$0xff]
  %v45 = vld [vmem:[%s0 + $0xf8] sm:$0xff]
  %v46 = vld [vmem:[%s0 + $0x100] sm:$0xff]
  %v47 = vld [vmem:[%s0 + $0x108] sm:$0xff]
  %v48 = vld [vmem:[%s0 + $0x110] sm:$0xff]
  %v49 = vld [vmem:[%s0 + $0x118] sm:$0xff]
  %v50 = vld [vmem:[%s0 + $0x120] sm:$0xff]
  %v51 = vld [vmem:[%s0 + $0x128] sm:$0xff]
  %v52 = vld [vmem:[%s0 + $0x130] sm:$0xff]
  %v53 = vld [vmem:[%s0 + $0x138] sm:$0xff]
  %v54 = vld [vmem:[%s0 + $0x140] sm:$0xff]
  %v55 = vld [vmem:[%s0 + $0x148] sm:$0xff]
  %v56 = vld [vmem:[%s0 + $0x150] sm:$0xff]
  %v57 = vld [vmem:[%s0 + $0x158] sm:$0xff]
  %v58 = vld [vmem:[%s0 + $0x160] sm:$0xff]
  %v59 = vld [vmem:[%s0 + $0x168] sm:$0xff]
  %v60 = vld [vmem:[%s0 + $0x170] sm:$0xff]
  %v61 = vld [vmem:[%s0 + $0x178] sm:$0xff]
  %v62 = vld [vmem:[%s0 + $0x180] sm:$0xff]
  %v63 = vld [vmem:[%s0 + $0x188] sm:$0xff]
  %v64 = vld [vmem:[%s0 + $0x190] sm:$0xff]
  %v65 = vld [vmem:[%s0 + $0x198] sm:$0xff]
  %v66 = vld [vmem:[%s0 + $0x1a0] sm:$0xff]
  %v67 = vld [vmem:[%s0 + $0x1a8] sm:$0xff]
  %v68 = vld [vmem:[%s0 + $0x1b0] sm:$0xff]
  %v69 = vld [vmem:[%s0 + $0x1b8] sm:$0xff]
  %v70 = vld [vmem:[%s0 + $0x1c0] sm:$0xff]
  %v71 = vld [vmem:[%s0 + $0x1c8] sm:$0xff]
  %v72 = vld [vmem:[%s0 + $0x1d0] sm:$0xff]
  %v73 = vld [vmem:[%s0 + $0x1d8] sm:$0xff]
  %v74 = vld [vmem:[%s0 + $0x1e0] sm:$0xff]
  %v75 = vld [vmem:[%s0 + $0x1e8] sm:$0xff]
  %v76 = vld [vmem:[%s0 + $0x1f0] sm:$0xff]
  %v77 = vld [vmem:[%s0 + $0x1f8] sm:$0xff]
  %v78 = vld [vmem:[%s0 + $0x200] sm:$0xff]
  %v79 = vld [vmem:[%s0 + $0x208] sm:$0xff]
  %v80 = vld [vmem:[%s0 + $0x210] sm:$0xff]
  %v81 = vld [vmem:[%s0 + $0x218] sm:$0xff]
  %v82 = vld [vmem:[%s0 + $0x220] sm:$0xff]
  %v83 = vld [vmem:[%s0 + $0x228] sm:$0xff]
  %v84 = vld [vmem:[%s0 + $0x230] sm:$0xff]
  %v85 = vld [vmem:[%s0 + $0x238] sm:$0xff]
  %v86 = vld [vmem:[%s0 + $0x240] sm:$0xff]
  %v87 = vld [vmem:[%s0 + $0x248] sm:$0xff]
  %v88 = vld [vmem:[%s0 + $0x250] sm:$0xff]
  %v89 = vld [vmem:[%s0 + $0x258] sm:$0xff]
  %v90 = vld [vmem:[%s0 + $0x260] sm:$0xff]
  %v91 = vld [vmem:[%s0 + $0x268] sm:$0xff]
  %v92 = vld [vmem:[%s0 + $0x270] sm:$0xff]
  %v93 = vld [vmem:[%s0 + $0x278] sm:$0xff]
  %v94 = vld [vmem:[%s0 + $0x280] sm:$0xff]
  %v95 = vld [vmem:[%s0 + $0x288] sm:$0xff]
  %v96 = vld [vmem:[%s0 + $0x290] sm:$0xff]
  %v97 = vld [vmem:[%s0 + $0x298] sm:$0xff]
  %v98 = vld [vmem:[%s0 + $0x2a0] sm:$0xff]
  %v99 = vld [vmem:[%s0 + $0x2a8] sm:$0xff]
  %v100 = vld [vmem:[%s0 + $0x2b0] sm:$0xff]
  %v101 = vld [vmem:[%s0 + $0x2b8] sm:$0xff]
  %v102 = vld [vmem:[%s0 + $0x2c0] sm:$0xff]
  %v103 = vld [vmem:[%s0 + $0x2c8] sm:$0xff]
  %v104 = vld [vmem:[%s0 + $0x2d0] sm:$0xff]
  %v105 = vld [vmem:[%s0 + $0x2d8] sm:$0xff]
  %v106 = vld [vmem:[%s0 + $0x2e0] sm:$0xff]
  %v107 = vld [vmem:[%s0 + $0x2e8] sm:$0xff]
  %v108 = vld [vmem:[%s0 + $0x2f0] sm:$0xff]
  %v109 = vld [vmem:[%s0 + $0x2f8] sm:$0xff]
  %v110 = vld [vmem:[%s0 + $0x300] sm:$0xff]
  %v111 = vld [vmem:[%s0 + $0x308] sm:$0xff]
  %v112 = vld [vmem:[%s0 + $0x310] sm:$0xff]
  %v113 = vld [vmem:[%s0 + $0x318] sm:$0xff]
  %v114 = vld [vmem:[%s0 + $0x320] sm:$0xff]
  %v115 = vld [vmem:[%s0 + $0x328] sm:$0xff]
  %v116 = vld [vmem:[%s0 + $0x330] sm:$0xff]
  %v117 = vld [vmem:[%s0 + $0x338] sm:$0xff]
  %v118 = vld [vmem:[%s0 + $0x340] sm:$0xff]
  %v119 = vld [vmem:[%s0 + $0x348] sm:$0xff]
  %v120 = vld [vmem:[%s0 + $0x350] sm:$0xff]
  %v121 = vld [vmem:[%s0 + $0x358] sm:$0xff]
  %v122 = vld [vmem:[%s0 + $0x360] sm:$0xff]
  %v123 = vld [vmem:[%s0 + $0x368] sm:$0xff]
  %v124 = vld [vmem:[%s0 + $0x370] sm:$0xff]
  %v125 = vld [vmem:[%s0 + $0x378] sm:$0xff]
  %v126 = vld [vmem:[%s0 + $0x380] sm:$0xff]
  %v127 = vld [vmem:[%s0 + $0x388] sm:$0xff]
  %v128 = vld [vmem:[%s0 + $0x390] sm:$0xff]
  %v129 = vld [vmem:[%s0 + $0x398] sm:$0xff]
  %v130 = vld [vmem:[%s0 + $0x3a0] sm:$0xff]
  %v131 = vld [vmem:[%s0 + $0x3a8] sm:$0xff]
  %v132 = vld [vmem:[%s0 + $0x3b0] sm:$0xff]
  %v133 = vld [vmem:[%s0 + $0x3b8] sm:$0xff]
  %v134 = vld [vmem:[%s0 + $0x3c0] sm:$0xff]
  %v135 = vld [vmem:[%s0 + $0x3c8] sm:$0xff]
  %v136 = vld [vmem:[%s0 + $0x3d0] sm:$0xff]
  %v137 = vld [vmem:[%s0 + $0x3d8] sm:$0xff]
  %v138 = vld [vmem:[%s0 + $0x3e0] sm:$0xff]
  %v139 = vld [vmem:[%s0 + $0x3e8] sm:$0xff]
  %v140 = vld [vmem:[%s0 + $0x3f0] sm:$0xff]
  %v141 = vld [vmem:[%s0 + $0x3f8] sm:$0xff]
  %v142 = vld [vmem:[%s1] sm:$0xff]
  %v143 = vld [vmem:[%s1 + $0x8] sm:$0xff]
  %v144 = vld [vmem:[%s1 + $0x10] sm:$0xff]
  %v145 = vld [vmem:[%s1 + $0x18] sm:$0xff]
  %v146 = vld [vmem:[%s1 + $0x20] sm:$0xff]
  %v147 = vld [vmem:[%s1 + $0x28] sm:$0xff]
  %v148 = vld [vmem:[%s1 + $0x30] sm:$0xff]
  %v149 = vld [vmem:[%s1 + $0x38] sm:$0xff]
  %v150 = vld [vmem:[%s1 + $0x40] sm:$0xff]
  %v151 = vld [vmem:[%s1 + $0x48] sm:$0xff]
  %v152 = vld [vmem:[%s1 + $0x50] sm:$0xff]
  %v153 = vld [vmem:[%s1 + $0x58] sm:$0xff]
  %v154 = vld [vmem:[%s1 + $0x60] sm:$0xff]
  %v155 = vld [vmem:[%s1 + $0x68] sm:$0xff]
  %v156 = vld [vmem:[%s1 + $0x70] sm:$0xff]
  %v157 = vld [vmem:[%s1 + $0x78] sm:$0xff]
  %v158 = vld [vmem:[%s1 + $0x80] sm:$0xff]
  %v159 = vld [vmem:[%s1 + $0x88] sm:$0xff]
  %v160 = vld [vmem:[%s1 + $0x90] sm:$0x7]
  %v161 = vld [vmem:[%s2] sm:$0x1]
  %v163 = vlaneseq
  %v164 = vshrl.u32 %v163, 7
  %v165 = vsub.s32 0, %v164
  %v166 = vrot.slane %v161, %v165
  %vm168 = vcmask 154624
  %v170 = vsel %vm168, %v15, 0
  %v173 = vsel %vm168, %v17, 0
  %v176 = vsel %vm168, %v19, 0
  %v179 = vsel %vm168, %v21, 0
  %v182 = vsel %vm168, %v23, 0
  %v185 = vsel %vm168, %v25, 0
  %v188 = vsel %vm168, %v27, 0
  %v191 = vsel %vm168, %v29, 0
  %v194 = vsel %vm168, %v31, 0
  %v197 = vsel %vm168, %v33, 0
  %v200 = vsel %vm168, %v35, 0
  %v203 = vsel %vm168, %v37, 0
  %v206 = vsel %vm168, %v39, 0
  %v209 = vsel %vm168, %v41, 0
  %v212 = vsel %vm168, %v43, 0
  %v215 = vsel %vm168, %v45, 0
  %v218 = vsel %vm168, %v47, 0
  %v221 = vsel %vm168, %v49, 0
  %v224 = vsel %vm168, %v51, 0
  %v227 = vsel %vm168, %v53, 0
  %v230 = vsel %vm168, %v55, 0
  %v233 = vsel %vm168, %v57, 0
  %v236 = vsel %vm168, %v59, 0
  %v239 = vsel %vm168, %v61, 0
  %v242 = vsel %vm168, %v63, 0
  %v245 = vsel %vm168, %v65, 0
  %v248 = vsel %vm168, %v67, 0
  %v251 = vsel %vm168, %v69, 0
  %v254 = vsel %vm168, %v71, 0
  %v257 = vsel %vm168, %v73, 0
  %v260 = vsel %vm168, %v75, 0
  %v263 = vsel %vm168, %v77, 0
  %v266 = vsel %vm168, %v79, 0
  %v269 = vsel %vm168, %v81, 0
  %v272 = vsel %vm168, %v83, 0
  %v275 = vsel %vm168, %v85, 0
  %v278 = vsel %vm168, %v87, 0
  %v281 = vsel %vm168, %v89, 0
  %v284 = vsel %vm168, %v91, 0
  %v287 = vsel %vm168, %v93, 0
  %v290 = vsel %vm168, %v95, 0
  %v293 = vsel %vm168, %v97, 0
  %v296 = vsel %vm168, %v99, 0
  %v299 = vsel %vm168, %v101, 0
  %v302 = vsel %vm168, %v103, 0
  %v305 = vsel %vm168, %v105, 0
  %v308 = vsel %vm168, %v107, 0
  %v311 = vsel %vm168, %v109, 0
  %v314 = vsel %vm168, %v111, 0
  %v317 = vsel %vm168, %v113, 0
  %v320 = vsel %vm168, %v115, 0
  %v323 = vsel %vm168, %v117, 0
  %v326 = vsel %vm168, %v119, 0
  %v329 = vsel %vm168, %v121, 0
  %v332 = vsel %vm168, %v123, 0
  %v335 = vsel %vm168, %v125, 0
  %v338 = vsel %vm168, %v127, 0
  %v341 = vsel %vm168, %v129, 0
  %v344 = vsel %vm168, %v131, 0
  %v347 = vsel %vm168, %v133, 0
  %v350 = vsel %vm168, %v135, 0
  %v353 = vsel %vm168, %v137, 0
  %v356 = vsel %vm168, %v139, 0
  %v359 = vsel %vm168, %v141, 0
  %vm361 = vcmask 1042432
  %v363 = vsel %vm361, %v160, 0
  %365 = vmatprep.subr.mxu0 0.0
  %366 = vmatpush1.msra.mxu0 %v157
  %367 = vmatprep.subr.mxu0 0.0
  %368 = vmatpush1.msra.mxu0 %v156
  %369 = vmatprep.subr.mxu0 0.0
  %370 = vmatpush1.msra.mxu0 %v155
  %371 = vmatprep.subr.mxu0 0.0
  %372 = vmatpush1.msra.mxu0 %v154
  %373 = vmatprep.subr.mxu0 0.0
  %374 = vmatpush1.msra.mxu0 %v153
  %375 = vmatprep.subr.mxu0 0.0
  %376 = vmatpush1.msra.mxu0 %v152
  %377 = vmatprep.subr.mxu0 0.0
  %378 = vmatpush1.msra.mxu0 %v151
  %379 = vmatprep.subr.mxu0 0.0
  %380 = vmatpush1.msra.mxu0 %v150
  %381 = vmatprep.subr.mxu0 0.0
  %382 = vmatpush1.msra.mxu0 %v149
  %383 = vmatprep.subr.mxu0 0.0
  %384 = vmatpush1.msra.mxu0 %v148
  %385 = vmatprep.subr.mxu0 0.0
  %386 = vmatpush1.msra.mxu0 %v147
  %387 = vmatprep.subr.mxu0 0.0
  %388 = vmatpush1.msra.mxu0 %v146
  %389 = vmatprep.subr.mxu0 0.0
  %390 = vmatpush1.msra.mxu0 %v145
  %391 = vmatprep.subr.mxu0 0.0
  %392 = vmatpush1.msra.mxu0 %v144
  %393 = vmatprep.subr.mxu0 0.0
  %394 = vmatpush1.msra.mxu0 %v143
  %395 = vmatprep.subr.mxu0 0.0
  %396 = vmatpush1.msra.mxu0 %v142
  %397 = vmatprep.subr.mxu0 0.0
  %398 = vmatpush2.msra.mxu0 0.0
  %399 = vmatprep.subr.mxu0 0.0
  %400 = vmatpush2.msra.mxu0 0.0
  %401 = vmatprep.subr.mxu0 0.0
  %402 = vmatpush2.msra.mxu0 0.0
  %403 = vmatprep.subr.mxu0 0.0
  %404 = vmatpush2.msra.mxu0 0.0
  %405 = vmatprep.subr.mxu0 0.0
  %406 = vmatpush2.msra.mxu0 0.0
  %407 = vmatprep.subr.mxu0 0.0
  %408 = vmatpush2.msra.mxu0 0.0
  %409 = vmatprep.subr.mxu0 0.0
  %410 = vmatpush2.msra.mxu0 0.0
  %411 = vmatprep.subr.mxu0 0.0
  %412 = vmatpush2.msra.mxu0 0.0
  %413 = vmatprep.subr.mxu0 0.0
  %414 = vmatpush2.msra.mxu0 0.0
  %415 = vmatprep.subr.mxu0 0.0
  %416 = vmatpush2.msra.mxu0 0.0
  %417 = vmatprep.subr.mxu0 0.0
  %418 = vmatpush2.msra.mxu0 0.0
  %419 = vmatprep.subr.mxu0 0.0
  %420 = vmatpush2.msra.mxu0 0.0
  %421 = vmatprep.subr.mxu0 0.0
  %422 = vmatpush2.msra.mxu0 0.0
  %423 = vmatprep.subr.mxu0 0.0
  %424 = vmatpush2.msra.mxu0 %v363
  %425 = vmatprep.subr.mxu0 0.0
  %426 = vmatpush2.msra.mxu0 %v159
  %427 = vmatprep.subr.mxu0 0.0
  %428 = vmatpush2.msra.mxu0 %v158
  %429 = vmatprep.mubr.f32.mxu0 %v170
  %430 = vmatmul.mubr.f32.gmra.mxu0 %v14
  %v431 = vpop.f32.mrf.mxu0
  %v432 = vadd.f32 %v166, %v431
  %v433 = vpop.f32.mrf.mxu0
  %434 = vmatprep.mubr.f32.mxu0 %v173
  %435 = vmatmul.mubr.f32.gmra.mxu0 %v16
  %v436 = vpop.f32.mrf.mxu0
  %v437 = vadd.f32 %v166, %v436
  %v438 = vpop.f32.mrf.mxu0
  %439 = vmatprep.mubr.f32.mxu0 %v176
  %440 = vmatmul.mubr.f32.gmra.mxu0 %v18
  %v441 = vpop.f32.mrf.mxu0
  %v442 = vadd.f32 %v166, %v441
  %v443 = vpop.f32.mrf.mxu0
  %444 = vmatprep.mubr.f32.mxu0 %v179
  %445 = vmatmul.mubr.f32.gmra.mxu0 %v20
  %v446 = vpop.f32.mrf.mxu0
  %v447 = vadd.f32 %v166, %v446
  %v448 = vpop.f32.mrf.mxu0
  %449 = vmatprep.mubr.f32.mxu0 %v182
  %450 = vmatmul.mubr.f32.gmra.mxu0 %v22
  %v451 = vpop.f32.mrf.mxu0
  %v452 = vadd.f32 %v166, %v451
  %v453 = vpop.f32.mrf.mxu0
  %454 = vmatprep.mubr.f32.mxu0 %v185
  %455 = vmatmul.mubr.f32.gmra.mxu0 %v24
  %v456 = vpop.f32.mrf.mxu0
  %v457 = vadd.f32 %v166, %v456
  %v458 = vpop.f32.mrf.mxu0
  %459 = vmatprep.mubr.f32.mxu0 %v188
  %460 = vmatmul.mubr.f32.gmra.mxu0 %v26
  %v461 = vpop.f32.mrf.mxu0
  %v462 = vadd.f32 %v166, %v461
  %v463 = vpop.f32.mrf.mxu0
  %464 = vmatprep.mubr.f32.mxu0 %v191
  %465 = vmatmul.mubr.f32.gmra.mxu0 %v28
  %v466 = vpop.f32.mrf.mxu0
  %v467 = vadd.f32 %v166, %v466
  %v468 = vpop.f32.mrf.mxu0
  %469 = vmatprep.mubr.f32.mxu0 %v194
  %470 = vmatmul.mubr.f32.gmra.mxu0 %v30
  %v471 = vpop.f32.mrf.mxu0
  %v472 = vadd.f32 %v166, %v471
  %v473 = vpop.f32.mrf.mxu0
  %474 = vmatprep.mubr.f32.mxu0 %v197
  %475 = vmatmul.mubr.f32.gmra.mxu0 %v32
  %v476 = vpop.f32.mrf.mxu0
  %v477 = vadd.f32 %v166, %v476
  %v478 = vpop.f32.mrf.mxu0
  %479 = vmatprep.mubr.f32.mxu0 %v200
  %480 = vmatmul.mubr.f32.gmra.mxu0 %v34
  %v481 = vpop.f32.mrf.mxu0
  %v482 = vadd.f32 %v166, %v481
  %v483 = vpop.f32.mrf.mxu0
  %484 = vmatprep.mubr.f32.mxu0 %v203
  %485 = vmatmul.mubr.f32.gmra.mxu0 %v36
  %v486 = vpop.f32.mrf.mxu0
  %v487 = vadd.f32 %v166, %v486
  %v488 = vpop.f32.mrf.mxu0
  %489 = vmatprep.mubr.f32.mxu0 %v206
  %490 = vmatmul.mubr.f32.gmra.mxu0 %v38
  %v491 = vpop.f32.mrf.mxu0
  %v492 = vadd.f32 %v166, %v491
  %v493 = vpop.f32.mrf.mxu0
  %494 = vmatprep.mubr.f32.mxu0 %v209
  %495 = vmatmul.mubr.f32.gmra.mxu0 %v40
  %v496 = vpop.f32.mrf.mxu0
  %v497 = vadd.f32 %v166, %v496
  %v498 = vpop.f32.mrf.mxu0
  %499 = vmatprep.mubr.f32.mxu0 %v212
  %500 = vmatmul.mubr.f32.gmra.mxu0 %v42
  %v501 = vpop.f32.mrf.mxu0
  %v502 = vadd.f32 %v166, %v501
  %v503 = vpop.f32.mrf.mxu0
  %504 = vmatprep.mubr.f32.mxu0 %v215
  %505 = vmatmul.mubr.f32.gmra.mxu0 %v44
  %v506 = vpop.f32.mrf.mxu0
  %v507 = vadd.f32 %v166, %v506
  %v508 = vpop.f32.mrf.mxu0
  %509 = vmatprep.mubr.f32.mxu0 %v218
  %510 = vmatmul.mubr.f32.gmra.mxu0 %v46
  %v511 = vpop.f32.mrf.mxu0
  %v512 = vadd.f32 %v166, %v511
  %v513 = vpop.f32.mrf.mxu0
  %514 = vmatprep.mubr.f32.mxu0 %v221
  %515 = vmatmul.mubr.f32.gmra.mxu0 %v48
  %v516 = vpop.f32.mrf.mxu0
  %v517 = vadd.f32 %v166, %v516
  %v518 = vpop.f32.mrf.mxu0
  %519 = vmatprep.mubr.f32.mxu0 %v224
  %520 = vmatmul.mubr.f32.gmra.mxu0 %v50
  %v521 = vpop.f32.mrf.mxu0
  %v522 = vadd.f32 %v166, %v521
  %v523 = vpop.f32.mrf.mxu0
  %524 = vmatprep.mubr.f32.mxu0 %v227
  %525 = vmatmul.mubr.f32.gmra.mxu0 %v52
  %v526 = vpop.f32.mrf.mxu0
  %v527 = vadd.f32 %v166, %v526
  %v528 = vpop.f32.mrf.mxu0
  %529 = vmatprep.mubr.f32.mxu0 %v230
  %530 = vmatmul.mubr.f32.gmra.mxu0 %v54
  %v531 = vpop.f32.mrf.mxu0
  %v532 = vadd.f32 %v166, %v531
  %v533 = vpop.f32.mrf.mxu0
  %534 = vmatprep.mubr.f32.mxu0 %v233
  %535 = vmatmul.mubr.f32.gmra.mxu0 %v56
  %v536 = vpop.f32.mrf.mxu0
  %v537 = vadd.f32 %v166, %v536
  %v538 = vpop.f32.mrf.mxu0
  %539 = vmatprep.mubr.f32.mxu0 %v236
  %540 = vmatmul.mubr.f32.gmra.mxu0 %v58
  %v541 = vpop.f32.mrf.mxu0
  %v542 = vadd.f32 %v166, %v541
  %v543 = vpop.f32.mrf.mxu0
  %544 = vmatprep.mubr.f32.mxu0 %v239
  %545 = vmatmul.mubr.f32.gmra.mxu0 %v60
  %v546 = vpop.f32.mrf.mxu0
  %v547 = vadd.f32 %v166, %v546
  %v548 = vpop.f32.mrf.mxu0
  %549 = vmatprep.mubr.f32.mxu0 %v242
  %550 = vmatmul.mubr.f32.gmra.mxu0 %v62
  %v551 = vpop.f32.mrf.mxu0
  %v552 = vadd.f32 %v166, %v551
  %v553 = vpop.f32.mrf.mxu0
  %554 = vmatprep.mubr.f32.mxu0 %v245
  %555 = vmatmul.mubr.f32.gmra.mxu0 %v64
  %v556 = vpop.f32.mrf.mxu0
  %v557 = vadd.f32 %v166, %v556
  %v558 = vpop.f32.mrf.mxu0
  %559 = vmatprep.mubr.f32.mxu0 %v248
  %560 = vmatmul.mubr.f32.gmra.mxu0 %v66
  %v561 = vpop.f32.mrf.mxu0
  %v562 = vadd.f32 %v166, %v561
  %v563 = vpop.f32.mrf.mxu0
  %564 = vmatprep.mubr.f32.mxu0 %v251
  %565 = vmatmul.mubr.f32.gmra.mxu0 %v68
  %v566 = vpop.f32.mrf.mxu0
  %v567 = vadd.f32 %v166, %v566
  %v568 = vpop.f32.mrf.mxu0
  %569 = vmatprep.mubr.f32.mxu0 %v254
  %570 = vmatmul.mubr.f32.gmra.mxu0 %v70
  %v571 = vpop.f32.mrf.mxu0
  %v572 = vadd.f32 %v166, %v571
  %v573 = vpop.f32.mrf.mxu0
  %574 = vmatprep.mubr.f32.mxu0 %v257
  %575 = vmatmul.mubr.f32.gmra.mxu0 %v72
  %v576 = vpop.f32.mrf.mxu0
  %v577 = vadd.f32 %v166, %v576
  %v578 = vpop.f32.mrf.mxu0
  %579 = vmatprep.mubr.f32.mxu0 %v260
  %580 = vmatmul.mubr.f32.gmra.mxu0 %v74
  %v581 = vpop.f32.mrf.mxu0
  %v582 = vadd.f32 %v166, %v581
  %v583 = vpop.f32.mrf.mxu0
  %584 = vmatprep.mubr.f32.mxu0 %v263
  %585 = vmatmul.mubr.f32.gmra.mxu0 %v76
  %v586 = vpop.f32.mrf.mxu0
  %v587 = vadd.f32 %v166, %v586
  %v588 = vpop.f32.mrf.mxu0
  %589 = vmatprep.mubr.f32.mxu0 %v266
  %590 = vmatmul.mubr.f32.gmra.mxu0 %v78
  %v591 = vpop.f32.mrf.mxu0
  %v592 = vadd.f32 %v166, %v591
  %v593 = vpop.f32.mrf.mxu0
  %594 = vmatprep.mubr.f32.mxu0 %v269
  %595 = vmatmul.mubr.f32.gmra.mxu0 %v80
  %v596 = vpop.f32.mrf.mxu0
  %v597 = vadd.f32 %v166, %v596
  %v598 = vpop.f32.mrf.mxu0
  %599 = vmatprep.mubr.f32.mxu0 %v272
  %600 = vmatmul.mubr.f32.gmra.mxu0 %v82
  %v601 = vpop.f32.mrf.mxu0
  %v602 = vadd.f32 %v166, %v601
  %v603 = vpop.f32.mrf.mxu0
  %604 = vmatprep.mubr.f32.mxu0 %v275
  %605 = vmatmul.mubr.f32.gmra.mxu0 %v84
  %v606 = vpop.f32.mrf.mxu0
  %v607 = vadd.f32 %v166, %v606
  %v608 = vpop.f32.mrf.mxu0
  %609 = vmatprep.mubr.f32.mxu0 %v278
  %610 = vmatmul.mubr.f32.gmra.mxu0 %v86
  %v611 = vpop.f32.mrf.mxu0
  %v612 = vadd.f32 %v166, %v611
  %v613 = vpop.f32.mrf.mxu0
  %614 = vmatprep.mubr.f32.mxu0 %v281
  %615 = vmatmul.mubr.f32.gmra.mxu0 %v88
  %v616 = vpop.f32.mrf.mxu0
  %v617 = vadd.f32 %v166, %v616
  %v618 = vpop.f32.mrf.mxu0
  %619 = vmatprep.mubr.f32.mxu0 %v284
  %620 = vmatmul.mubr.f32.gmra.mxu0 %v90
  %v621 = vpop.f32.mrf.mxu0
  %v622 = vadd.f32 %v166, %v621
  %v623 = vpop.f32.mrf.mxu0
  %624 = vmatprep.mubr.f32.mxu0 %v287
  %625 = vmatmul.mubr.f32.gmra.mxu0 %v92
  %v626 = vpop.f32.mrf.mxu0
  %v627 = vadd.f32 %v166, %v626
  %v628 = vpop.f32.mrf.mxu0
  %629 = vmatprep.mubr.f32.mxu0 %v290
  %630 = vmatmul.mubr.f32.gmra.mxu0 %v94
  %v631 = vpop.f32.mrf.mxu0
  %v632 = vadd.f32 %v166, %v631
  %v633 = vpop.f32.mrf.mxu0
  %634 = vmatprep.mubr.f32.mxu0 %v293
  %635 = vmatmul.mubr.f32.gmra.mxu0 %v96
  %v636 = vpop.f32.mrf.mxu0
  %v637 = vadd.f32 %v166, %v636
  %v638 = vpop.f32.mrf.mxu0
  %639 = vmatprep.mubr.f32.mxu0 %v296
  %640 = vmatmul.mubr.f32.gmra.mxu0 %v98
  %v641 = vpop.f32.mrf.mxu0
  %v642 = vadd.f32 %v166, %v641
  %v643 = vpop.f32.mrf.mxu0
  %644 = vmatprep.mubr.f32.mxu0 %v299
  %645 = vmatmul.mubr.f32.gmra.mxu0 %v100
  %v646 = vpop.f32.mrf.mxu0
  %v647 = vadd.f32 %v166, %v646
  %v648 = vpop.f32.mrf.mxu0
  %649 = vmatprep.mubr.f32.mxu0 %v302
  %650 = vmatmul.mubr.f32.gmra.mxu0 %v102
  %v651 = vpop.f32.mrf.mxu0
  %v652 = vadd.f32 %v166, %v651
  %v653 = vpop.f32.mrf.mxu0
  %654 = vmatprep.mubr.f32.mxu0 %v305
  %655 = vmatmul.mubr.f32.gmra.mxu0 %v104
  %v656 = vpop.f32.mrf.mxu0
  %v657 = vadd.f32 %v166, %v656
  %v658 = vpop.f32.mrf.mxu0
  %659 = vmatprep.mubr.f32.mxu0 %v308
  %660 = vmatmul.mubr.f32.gmra.mxu0 %v106
  %v661 = vpop.f32.mrf.mxu0
  %v662 = vadd.f32 %v166, %v661
  %v663 = vpop.f32.mrf.mxu0
  %664 = vmatprep.mubr.f32.mxu0 %v311
  %665 = vmatmul.mubr.f32.gmra.mxu0 %v108
  %v666 = vpop.f32.mrf.mxu0
  %v667 = vadd.f32 %v166, %v666
  %v668 = vpop.f32.mrf.mxu0
  %669 = vmatprep.mubr.f32.mxu0 %v314
  %670 = vmatmul.mubr.f32.gmra.mxu0 %v110
  %v671 = vpop.f32.mrf.mxu0
  %v672 = vadd.f32 %v166, %v671
  %v673 = vpop.f32.mrf.mxu0
  %674 = vmatprep.mubr.f32.mxu0 %v317
  %675 = vmatmul.mubr.f32.gmra.mxu0 %v112
  %v676 = vpop.f32.mrf.mxu0
  %v677 = vadd.f32 %v166, %v676
  %v678 = vpop.f32.mrf.mxu0
  %679 = vmatprep.mubr.f32.mxu0 %v320
  %680 = vmatmul.mubr.f32.gmra.mxu0 %v114
  %v681 = vpop.f32.mrf.mxu0
  %v682 = vadd.f32 %v166, %v681
  %v683 = vpop.f32.mrf.mxu0
  %684 = vmatprep.mubr.f32.mxu0 %v323
  %685 = vmatmul.mubr.f32.gmra.mxu0 %v116
  %v686 = vpop.f32.mrf.mxu0
  %v687 = vadd.f32 %v166, %v686
  %v688 = vpop.f32.mrf.mxu0
  %689 = vmatprep.mubr.f32.mxu0 %v326
  %690 = vmatmul.mubr.f32.gmra.mxu0 %v118
  %v691 = vpop.f32.mrf.mxu0
  %v692 = vadd.f32 %v166, %v691
  %v693 = vpop.f32.mrf.mxu0
  %694 = vmatprep.mubr.f32.mxu0 %v329
  %695 = vmatmul.mubr.f32.gmra.mxu0 %v120
  %v696 = vpop.f32.mrf.mxu0
  %v697 = vadd.f32 %v166, %v696
  %v698 = vpop.f32.mrf.mxu0
  %699 = vmatprep.mubr.f32.mxu0 %v332
  %700 = vmatmul.mubr.f32.gmra.mxu0 %v122
  %v701 = vpop.f32.mrf.mxu0
  %v702 = vadd.f32 %v166, %v701
  %v703 = vpop.f32.mrf.mxu0
  %704 = vmatprep.mubr.f32.mxu0 %v335
  %705 = vmatmul.mubr.f32.gmra.mxu0 %v124
  %v706 = vpop.f32.mrf.mxu0
  %v707 = vadd.f32 %v166, %v706
  %v708 = vpop.f32.mrf.mxu0
  %709 = vmatprep.mubr.f32.mxu0 %v338
  %710 = vmatmul.mubr.f32.gmra.mxu0 %v126
  %v711 = vpop.f32.mrf.mxu0
  %v712 = vadd.f32 %v166, %v711
  %v713 = vpop.f32.mrf.mxu0
  %714 = vmatprep.mubr.f32.mxu0 %v341
  %715 = vmatmul.mubr.f32.gmra.mxu0 %v128
  %v716 = vpop.f32.mrf.mxu0
  %v717 = vadd.f32 %v166, %v716
  %v718 = vpop.f32.mrf.mxu0
  %719 = vmatprep.mubr.f32.mxu0 %v344
  %720 = vmatmul.mubr.f32.gmra.mxu0 %v130
  %v721 = vpop.f32.mrf.mxu0
  %v722 = vadd.f32 %v166, %v721
  %v723 = vpop.f32.mrf.mxu0
  %724 = vmatprep.mubr.f32.mxu0 %v347
  %725 = vmatmul.mubr.f32.gmra.mxu0 %v132
  %v726 = vpop.f32.mrf.mxu0
  %v727 = vadd.f32 %v166, %v726
  %v728 = vpop.f32.mrf.mxu0
  %729 = vmatprep.mubr.f32.mxu0 %v350
  %730 = vmatmul.mubr.f32.gmra.mxu0 %v134
  %v731 = vpop.f32.mrf.mxu0
  %v732 = vadd.f32 %v166, %v731
  %v733 = vpop.f32.mrf.mxu0
  %734 = vmatprep.mubr.f32.mxu0 %v353
  %735 = vmatmul.mubr.f32.gmra.mxu0 %v136
  %v736 = vpop.f32.mrf.mxu0
  %v737 = vadd.f32 %v166, %v736
  %v738 = vpop.f32.mrf.mxu0
  %739 = vmatprep.mubr.f32.mxu0 %v356
  %740 = vmatmul.mubr.f32.gmra.mxu0 %v138
  %v741 = vpop.f32.mrf.mxu0
  %v742 = vadd.f32 %v166, %v741
  %v743 = vpop.f32.mrf.mxu0
  %744 = vmatprep.mubr.f32.mxu0 %v359
  %745 = vmatmul.mubr.f32.gmra.mxu0 %v140
  %v746 = vpop.f32.mrf.mxu0
  %v747 = vadd.f32 %v166, %v746
  %v748 = vpop.f32.mrf.mxu0
  %749 = vdwg.mxu0
  %vm750 = vcmask 64512
  %751 = vst.msk [vmem:[%s3] sm:$0xff] %vm750, %v432
  %752 = vst.msk [vmem:[%s3 + $0x8] sm:$0xff] %vm750, %v437
  %753 = vst.msk [vmem:[%s3 + $0x10] sm:$0xff] %vm750, %v442
  %754 = vst.msk [vmem:[%s3 + $0x18] sm:$0xff] %vm750, %v447
  %755 = vst.msk [vmem:[%s3 + $0x20] sm:$0xff] %vm750, %v452
  %756 = vst.msk [vmem:[%s3 + $0x28] sm:$0xff] %vm750, %v457
  %757 = vst.msk [vmem:[%s3 + $0x30] sm:$0xff] %vm750, %v462
  %758 = vst.msk [vmem:[%s3 + $0x38] sm:$0xff] %vm750, %v467
  %759 = vst.msk [vmem:[%s3 + $0x40] sm:$0xff] %vm750, %v472
  %760 = vst.msk [vmem:[%s3 + $0x48] sm:$0xff] %vm750, %v477
  %761 = vst.msk [vmem:[%s3 + $0x50] sm:$0xff] %vm750, %v482
  %762 = vst.msk [vmem:[%s3 + $0x58] sm:$0xff] %vm750, %v487
  %763 = vst.msk [vmem:[%s3 + $0x60] sm:$0xff] %vm750, %v492
  %764 = vst.msk [vmem:[%s3 + $0x68] sm:$0xff] %vm750, %v497
  %765 = vst.msk [vmem:[%s3 + $0x70] sm:$0xff] %vm750, %v502
  %766 = vst.msk [vmem:[%s3 + $0x78] sm:$0xff] %vm750, %v507
  %767 = vst.msk [vmem:[%s3 + $0x80] sm:$0xff] %vm750, %v512
  %768 = vst.msk [vmem:[%s3 + $0x88] sm:$0xff] %vm750, %v517
  %769 = vst.msk [vmem:[%s3 + $0x90] sm:$0xff] %vm750, %v522
  %770 = vst.msk [vmem:[%s3 + $0x98] sm:$0xff] %vm750, %v527
  %771 = vst.msk [vmem:[%s3 + $0xa0] sm:$0xff] %vm750, %v532
  %772 = vst.msk [vmem:[%s3 + $0xa8] sm:$0xff] %vm750, %v537
  %773 = vst.msk [vmem:[%s3 + $0xb0] sm:$0xff] %vm750, %v542
  %774 = vst.msk [vmem:[%s3 + $0xb8] sm:$0xff] %vm750, %v547
  %775 = vst.msk [vmem:[%s3 + $0xc0] sm:$0xff] %vm750, %v552
  %776 = vst.msk [vmem:[%s3 + $0xc8] sm:$0xff] %vm750, %v557
  %777 = vst.msk [vmem:[%s3 + $0xd0] sm:$0xff] %vm750, %v562
  %778 = vst.msk [vmem:[%s3 + $0xd8] sm:$0xff] %vm750, %v567
  %779 = vst.msk [vmem:[%s3 + $0xe0] sm:$0xff] %vm750, %v572
  %780 = vst.msk [vmem:[%s3 + $0xe8] sm:$0xff] %vm750, %v577
  %781 = vst.msk [vmem:[%s3 + $0xf0] sm:$0xff] %vm750, %v582
  %782 = vst.msk [vmem:[%s3 + $0xf8] sm:$0xff] %vm750, %v587
  %783 = vst.msk [vmem:[%s3 + $0x100] sm:$0xff] %vm750, %v592
  %784 = vst.msk [vmem:[%s3 + $0x108] sm:$0xff] %vm750, %v597
  %785 = vst.msk [vmem:[%s3 + $0x110] sm:$0xff] %vm750, %v602
  %786 = vst.msk [vmem:[%s3 + $0x118] sm:$0xff] %vm750, %v607
  %787 = vst.msk [vmem:[%s3 + $0x120] sm:$0xff] %vm750, %v612
  %788 = vst.msk [vmem:[%s3 + $0x128] sm:$0xff] %vm750, %v617
  %789 = vst.msk [vmem:[%s3 + $0x130] sm:$0xff] %vm750, %v622
  %790 = vst.msk [vmem:[%s3 + $0x138] sm:$0xff] %vm750, %v627
  %791 = vst.msk [vmem:[%s3 + $0x140] sm:$0xff] %vm750, %v632
  %792 = vst.msk [vmem:[%s3 + $0x148] sm:$0xff] %vm750, %v637
  %793 = vst.msk [vmem:[%s3 + $0x150] sm:$0xff] %vm750, %v642
  %794 = vst.msk [vmem:[%s3 + $0x158] sm:$0xff] %vm750, %v647
  %795 = vst.msk [vmem:[%s3 + $0x160] sm:$0xff] %vm750, %v652
  %796 = vst.msk [vmem:[%s3 + $0x168] sm:$0xff] %vm750, %v657
  %797 = vst.msk [vmem:[%s3 + $0x170] sm:$0xff] %vm750, %v662
  %798 = vst.msk [vmem:[%s3 + $0x178] sm:$0xff] %vm750, %v667
  %799 = vst.msk [vmem:[%s3 + $0x180] sm:$0xff] %vm750, %v672
  %800 = vst.msk [vmem:[%s3 + $0x188] sm:$0xff] %vm750, %v677
  %801 = vst.msk [vmem:[%s3 + $0x190] sm:$0xff] %vm750, %v682
  %802 = vst.msk [vmem:[%s3 + $0x198] sm:$0xff] %vm750, %v687
  %803 = vst.msk [vmem:[%s3 + $0x1a0] sm:$0xff] %vm750, %v692
  %804 = vst.msk [vmem:[%s3 + $0x1a8] sm:$0xff] %vm750, %v697
  %805 = vst.msk [vmem:[%s3 + $0x1b0] sm:$0xff] %vm750, %v702
  %806 = vst.msk [vmem:[%s3 + $0x1b8] sm:$0xff] %vm750, %v707
  %807 = vst.msk [vmem:[%s3 + $0x1c0] sm:$0xff] %vm750, %v712
  %808 = vst.msk [vmem:[%s3 + $0x1c8] sm:$0xff] %vm750, %v717
  %809 = vst.msk [vmem:[%s3 + $0x1d0] sm:$0xff] %vm750, %v722
  %810 = vst.msk [vmem:[%s3 + $0x1d8] sm:$0xff] %vm750, %v727
  %811 = vst.msk [vmem:[%s3 + $0x1e0] sm:$0xff] %vm750, %v732
  %812 = vst.msk [vmem:[%s3 + $0x1e8] sm:$0xff] %vm750, %v737
  %813 = vst.msk [vmem:[%s3 + $0x1f0] sm:$0xff] %vm750, %v742
  %814 = vst.msk [vmem:[%s3 + $0x1f8] sm:$0xff] %vm750, %v747
  // Predicated region
  $region14: #{tpu_custom_call.1} parent=0 // pred_check
    _
  $region15: #{tpu_custom_call.1} parent=0 // pred_check_branch
    %816 = sbr.rel (0) target = $region17
  $region16: #{tpu_custom_call.1} parent=0 // pred_region
    _
  $region17: #{tpu_custom_call.1} parent=0 // pred_fallthru
    _
  // Predicated region
  $region18: #{tpu_custom_call.1} parent=0 // pred_check
    _
  $region19: #{tpu_custom_call.1} parent=0 // pred_check_branch
    %818 = sbr.rel (0) target = $region21
  $region20: #{tpu_custom_call.1} parent=0 // pred_region
    _
  $region21: #{tpu_custom_call.1} parent=0 // pred_fallthru
    _

</llo_original>
